<compile_context>
chip_gen: v5e
topology: v5e:2x2
jax: 0.10.0
libtpu: 0.0.40
codegen_flags: <defaults>
</compile_context>

<pallas_src>
import functools

import jax
import jax.numpy as jnp
from jax import lax
from jax.experimental import pallas as pl
from jax.experimental.pallas import tpu as pltpu

_HALO = 8       # one 8-row (sublane-granular) halo slab
_LANE = 128     # lane width


def _cdiv(a, b):
    return (a + b - 1) // b


def _round_up(v, m):
    return ((v + m - 1) // m) * m


def _default_vmem_limit_bytes():
    """Per-generation scoped-VMEM limit: half of per-core VMEM, capped at 64 MiB.

    v5e/v6e (128 MiB VMEM) -> 64 MiB; v7x (64 MiB VMEM) -> 32 MiB.
    Falls back to the v7x-safe 32 MiB if the hardware query is unavailable.
    """
    cap = 64 * 1024 * 1024
    try:
        info = pltpu.get_tpu_info()
        c = getattr(info, "vmem_capacity_bytes", None)
        if c:
            cap = int(c)
    except Exception:
        pass
    return max(32 * 1024 * 1024, min(cap // 2, 64 * 1024 * 1024))


def _dual_update_kernel(sigma_ref, x_ref, xnext_ref, y_ref, out_ref, *, true_m, true_n):
    """One (TM, N_blk) row tile of the dual update.

    xnext_ref holds an 8-row halo starting at the first row of the next tile, so the
    vertical forward difference is correct across tile seams. Boundary masks use the
    real image size (true_m, true_n), so the clipped (out-of-bounds) parts of the
    boundary blocks never contaminate real output.
    """
    sigma = sigma_ref[0, 0]                     # scalar from SMEM
    i = pl.program_id(0)

    x = x_ref[0, :, :]                          # (TM, N_blk) f32, always (8,128)-aligned
    tm, nblk = x.shape

    # ---- horizontal forward difference (XLU roll; lane shift is ~free) ----
    x_right = pltpu.roll(x, nblk - 1, 1)        # x_right[:, c] = x[:, (c+1) % N_blk]
    col = lax.broadcasted_iota(jnp.int32, (1, nblk), 1)          # rank-1 lane mask
    dx = jnp.where(col < true_n - 1, x_right - x, 0.0)

    # ---- vertical forward difference (roll inside the tile + halo row at the seam) ----
    x_down = pltpu.roll(x, tm - 1, 0)           # x_down[r, :] = x[(r+1) % tm, :]
    halo_row = xnext_ref[0, 0:1, :]             # first row of the next tile, (1, N_blk)
    lrow = lax.broadcasted_iota(jnp.int32, (tm, 1), 0)           # rank-1 sublane mask
    x_down = jnp.where(lrow < tm - 1, x_down, halo_row)
    grow = lrow + i * tm                        # global row index of each tile row
    dy = jnp.where(grow < true_m - 1, x_down - x, 0.0)

    out_ref[0, :, :] = y_ref[0, :, :] + sigma * dx
    out_ref[1, :, :] = y_ref[1, :, :] + sigma * dy


def dual_update(x_tilde, y, sigma, *, tile_rows=None, vmem_limit_bytes=None):
    """x_tilde: [1, M, N] f32, y: [2, M, N] f32, sigma: scalar or [1] f32 -> [2, M, N] f32."""
    _, M, N = x_tilde.shape
    assert y.shape == (2, M, N), "y must be [2, M, N]"
    sigma_arr = jnp.asarray(sigma, dtype=jnp.float32).reshape(1, 1)

    x_p = x_tilde.astype(jnp.float32)
    y_p = y.astype(jnp.float32)

    # Lane-dense block width (>= N, multiple of 128). Pallas clips the boundary block,
    # so no wrapper-side padding / slicing is needed (edge columns use masked stores).
    n_blk = _round_up(max(N, _LANE), _LANE)

    vmem_limit = int(vmem_limit_bytes) if vmem_limit_bytes is not None else _default_vmem_limit_bytes()
    budget = (vmem_limit * 3) // 4              # leave headroom under the scoped limit

    if tile_rows is None:
        # ~64 * TM * N_blk bytes covers the declared double-buffered blocks
        # (~40 * TM * N_blk: x + halo + 2ch y in + 2ch out, x2 buffers) plus the
        # Mosaic temporaries materialized by the rolls / selects.
        tm = (budget // (64 * n_blk)) // _HALO * _HALO
        tm = max(_HALO, min(1024, tm))
        if M >= 2 * _HALO:
            # Ensure >= 2 row tiles so the "parallel" axis feeds both v7x TensorCores.
            tm = min(tm, _round_up(_cdiv(M, 2), _HALO))
    else:
        assert tile_rows > 0 and tile_rows % _HALO == 0, "tile_rows must be a positive multiple of 8"
        tm = tile_rows
    tm = min(tm, _round_up(M, _HALO))

    num_tiles = _cdiv(M, tm)
    halo_last = max(_cdiv(M, _HALO) - 1, 0)     # last valid 8-row halo block index

    kernel = functools.partial(_dual_update_kernel, true_m=M, true_n=N)

    out = pl.pallas_call(
        kernel,
        out_shape=jax.ShapeDtypeStruct((2, M, N), jnp.float32),
        grid=(num_tiles,),
        in_specs=[
            pl.BlockSpec(memory_space=pltpu.MemorySpace.SMEM),           # sigma scalar
            pl.BlockSpec((1, tm, n_blk), lambda i: (0, i, 0)),           # x row tile
            pl.BlockSpec(                                                # 8-row halo from next tile
                (1, _HALO, n_blk),
                lambda i: (0, jnp.minimum((i + 1) * (tm // _HALO), halo_last), 0)),
            pl.BlockSpec((2, tm, n_blk), lambda i: (0, i, 0)),           # y row tile
        ],
        out_specs=pl.BlockSpec((2, tm, n_blk), lambda i: (0, i, 0)),
        input_output_aliases={3: 0},                                     # dual y updated in place
        compiler_params=pltpu.CompilerParams(
            dimension_semantics=("parallel",),       # independent row tiles -> both v7x TCs
            vmem_limit_bytes=vmem_limit,
        ),
        cost_estimate=pl.CostEstimate(
            flops=6 * M * N,
            transcendentals=0,
            bytes_accessed=(5 * M * N + _HALO * num_tiles * N) * 4,
        ),
    )(sigma_arr, x_p, x_p, y_p)

    return out


def _reference(x_tilde, y, sigma):
    """Pure-JAX reference mirroring the PyTorch ForwardGradient + DualUpdate."""
    x = x_tilde[0]
    M, N = x.shape
    grad = jnp.zeros((2, M, N), jnp.float32)
    grad = grad.at[0, :, : N - 1].set(x[:, 1:] - x[:, : N - 1])
    grad = grad.at[1, : M - 1, :].set(x[1:, :] - x[: M - 1, :])
    return y + sigma * grad


if __name__ == "__main__":
    key = jax.random.PRNGKey(0)
    k1, k2, k3, k4, k5, k6 = jax.random.split(key, 6)
    sigma = jnp.asarray([0.25], dtype=jnp.float32)   # matches PyTorch sigma tensor [1]

    # Case 1: lane-aligned image, forced small row tile -> multiple grid tiles,
    # exercising the cross-tile halo path.
    M1, N1 = 48, 128
    x1 = jax.random.normal(k1, (1, M1, N1), dtype=jnp.float32)
    y1 = jax.random.normal(k2, (2, M1, N1), dtype=jnp.float32)
    out1 = jax.block_until_ready(dual_update(x1, y1, sigma, tile_rows=16))
    ref1 = _reference(x1, y1, sigma[0])
    assert out1.shape == (2, M1, N1)
    assert out1.dtype == jnp.float32
    assert jnp.allclose(out1, ref1, atol=1e-5, rtol=1e-5)

    # Case 2: unaligned image size -> exercises clipped boundary blocks (rows + lanes),
    # the in-kernel true_m/true_n masks, and the auto >=2-tile split.
    M2, N2 = 21, 100
    x2 = jax.random.normal(k3, (1, M2, N2), dtype=jnp.float32)
    y2 = jax.random.normal(k4, (2, M2, N2), dtype=jnp.float32)
    out2 = jax.block_until_ready(dual_update(x2, y2, sigma))
    ref2 = _reference(x2, y2, sigma[0])
    assert out2.shape == (2, M2, N2)
    assert jnp.allclose(out2, ref2, atol=1e-5, rtol=1e-5)

    # Case 3: default (auto) tiling on an aligned-but-non-tile-multiple height ->
    # auto tile sizing + halo seam with the budget-derived TM.
    M3, N3 = 40, 256
    x3 = jax.random.normal(k5, (1, M3, N3), dtype=jnp.float32)
    y3 = jax.random.normal(k6, (2, M3, N3), dtype=jnp.float32)
    out3 = jax.block_until_ready(dual_update(x3, y3, sigma))
    ref3 = _reference(x3, y3, sigma[0])
    assert out3.shape == (2, M3, N3)
    assert jnp.allclose(out3, ref3, atol=1e-5, rtol=1e-5)

    print("KERNEL_OK")
</pallas_src>

<mosaic_0001>
module attributes {stable_mosaic.version = 11 : i64} {
  func.func @_dual_update_kernel(%arg0: i32, %arg1: memref<1x1xf32, #tpu.memory_space<smem>>, %arg2: memref<1x16x128xf32, #tpu.memory_space<vmem>>, %arg3: memref<1x8x128xf32, #tpu.memory_space<vmem>>, %arg4: memref<2x16x128xf32, #tpu.memory_space<vmem>>, %arg5: memref<2x16x128xf32, #tpu.memory_space<vmem>>) attributes {dimension_semantics = [#tpu.dimension_semantics<parallel>], iteration_bounds = array<i64: 3>, scalar_prefetch = 0 : i64, scratch_operands = 0 : i64, tpu.core_type = #tpu.core_type<tc>, window_params = [{transform_indices = @transform_0, window_bounds = array<i64: 1, 1>}, {transform_indices = @transform_1, window_bounds = array<i64: 1, 16, 128>}, {transform_indices = @transform_2, window_bounds = array<i64: 1, 8, 128>}, {transform_indices = @transform_3, window_bounds = array<i64: 2, 16, 128>}, {transform_indices = @transform_4, window_bounds = array<i64: 2, 16, 128>}]} {
    %c0 = arith.constant 0 : index
    %c0_0 = arith.constant 0 : index
    %0 = memref.load %arg1[%c0, %c0_0] : memref<1x1xf32, #tpu.memory_space<smem>>
    %c0_1 = arith.constant 0 : index
    %c0_2 = arith.constant 0 : index
    %c0_3 = arith.constant 0 : index
    %1 = vector.load %arg2[%c0_1, %c0_2, %c0_3] : memref<1x16x128xf32, #tpu.memory_space<vmem>>, vector<1x16x128xf32>
    %2 = vector.shape_cast %1 : vector<1x16x128xf32> to vector<16x128xf32>
    %c127_i32 = arith.constant 127 : i32
    %3 = tpu.dynamic_rotate %2 by %c127_i32 dim 1 : vector<16x128xf32>, i32 -> vector<16x128xf32>
    %4 = tpu.iota {dimensions = array<i32: 1>} : vector<1x128xi32>
    %c127_i32_4 = arith.constant 127 : i32
    %5 = vector.broadcast %c127_i32_4 : i32 to vector<1x128xi32>
    %6 = arith.cmpi slt, %4, %5 : vector<1x128xi32>
    %7 = arith.subf %3, %2 : vector<16x128xf32>
    %cst = arith.constant 0.000000e+00 : f32
    %8 = vector.shape_cast %6 : vector<1x128xi1> to vector<1x128xi1>
    %9 = vector.broadcast %8 : vector<1x128xi1> to vector<16x128xi1>
    %10 = vector.broadcast %cst : f32 to vector<16x128xf32>
    %11 = arith.select %9, %7, %10 : vector<16x128xi1>, vector<16x128xf32>
    %c15_i32 = arith.constant 15 : i32
    %12 = tpu.dynamic_rotate %2 by %c15_i32 dim 0 : vector<16x128xf32>, i32 -> vector<16x128xf32>
    %c0_5 = arith.constant 0 : index
    %c0_6 = arith.constant 0 : index
    %c0_7 = arith.constant 0 : index
    %13 = vector.load %arg3[%c0_5, %c0_6, %c0_7] : memref<1x8x128xf32, #tpu.memory_space<vmem>>, vector<1x1x128xf32>
    %14 = vector.shape_cast %13 : vector<1x1x128xf32> to vector<1x128xf32>
    %15 = tpu.iota {dimensions = array<i32: 0>} : vector<16x1xi32>
    %c15_i32_8 = arith.constant 15 : i32
    %16 = vector.broadcast %c15_i32_8 : i32 to vector<16x1xi32>
    %17 = arith.cmpi slt, %15, %16 : vector<16x1xi32>
    %18 = vector.shape_cast %17 : vector<16x1xi1> to vector<16x1xi1>
    %19 = vector.broadcast %18 : vector<16x1xi1> to vector<16x128xi1>
    %20 = vector.shape_cast %14 : vector<1x128xf32> to vector<1x128xf32>
    %21 = vector.broadcast %20 : vector<1x128xf32> to vector<16x128xf32>
    %22 = arith.select %19, %12, %21 : vector<16x128xi1>, vector<16x128xf32>
    %c16_i32 = arith.constant 16 : i32
    %23 = arith.muli %arg0, %c16_i32 : i32
    %24 = vector.broadcast %23 : i32 to vector<16x1xi32>
    %25 = arith.addi %15, %24 : vector<16x1xi32>
    %c47_i32 = arith.constant 47 : i32
    %26 = vector.broadcast %c47_i32 : i32 to vector<16x1xi32>
    %27 = arith.cmpi slt, %25, %26 : vector<16x1xi32>
    %28 = arith.subf %22, %2 : vector<16x128xf32>
    %cst_9 = arith.constant 0.000000e+00 : f32
    %29 = vector.shape_cast %27 : vector<16x1xi1> to vector<16x1xi1>
    %30 = vector.broadcast %29 : vector<16x1xi1> to vector<16x128xi1>
    %31 = vector.broadcast %cst_9 : f32 to vector<16x128xf32>
    %32 = arith.select %30, %28, %31 : vector<16x128xi1>, vector<16x128xf32>
    %c0_10 = arith.constant 0 : index
    %c0_11 = arith.constant 0 : index
    %c0_12 = arith.constant 0 : index
    %33 = vector.load %arg4[%c0_10, %c0_11, %c0_12] : memref<2x16x128xf32, #tpu.memory_space<vmem>>, vector<1x16x128xf32>
    %34 = vector.shape_cast %33 : vector<1x16x128xf32> to vector<16x128xf32>
    %35 = vector.broadcast %0 : f32 to vector<16x128xf32>
    %36 = arith.mulf %35, %11 : vector<16x128xf32>
    %37 = arith.addf %34, %36 : vector<16x128xf32>
    %c0_13 = arith.constant 0 : index
    %c0_14 = arith.constant 0 : index
    %c0_15 = arith.constant 0 : index
    %38 = vector.load %arg5[%c0_13, %c0_14, %c0_15] : memref<2x16x128xf32, #tpu.memory_space<vmem>>, vector<1x16x128xf32>
    %39 = vector.shape_cast %38 : vector<1x16x128xf32> to vector<16x128xf32>
    %40 = vector.shape_cast %37 : vector<16x128xf32> to vector<1x16x128xf32>
    tpu.vector_store %arg5[%c0_13, %c0_14, %c0_15], %40 {strides = array<i32>} : memref<2x16x128xf32, #tpu.memory_space<vmem>>, vector<1x16x128xf32>,
    %c1 = arith.constant 1 : index
    %c0_16 = arith.constant 0 : index
    %c0_17 = arith.constant 0 : index
    %41 = vector.load %arg4[%c1, %c0_16, %c0_17] : memref<2x16x128xf32, #tpu.memory_space<vmem>>, vector<1x16x128xf32>
    %42 = vector.shape_cast %41 : vector<1x16x128xf32> to vector<16x128xf32>
    %43 = vector.broadcast %0 : f32 to vector<16x128xf32>
    %44 = arith.mulf %43, %32 : vector<16x128xf32>
    %45 = arith.addf %42, %44 : vector<16x128xf32>
    %c1_18 = arith.constant 1 : index
    %c0_19 = arith.constant 0 : index
    %c0_20 = arith.constant 0 : index
    %46 = vector.load %arg5[%c1_18, %c0_19, %c0_20] : memref<2x16x128xf32, #tpu.memory_space<vmem>>, vector<1x16x128xf32>
    %47 = vector.shape_cast %46 : vector<1x16x128xf32> to vector<16x128xf32>
    %48 = vector.shape_cast %45 : vector<16x128xf32> to vector<1x16x128xf32>
    tpu.vector_store %arg5[%c1_18, %c0_19, %c0_20], %48 {strides = array<i32>} : memref<2x16x128xf32, #tpu.memory_space<vmem>>, vector<1x16x128xf32>,
    return
  }
  func.func @transform_0(%arg0: i32) -> (i32, i32) {
    %c0_i32 = arith.constant 0 : i32
    %c0_i32_0 = arith.constant 0 : i32
    %c0_i32_1 = arith.constant 0 : i32
    return %c0_i32, %c0_i32_0 : i32, i32
  }
  func.func @transform_1(%arg0: i32) -> (i32, i32, i32) {
    %c0_i32 = arith.constant 0 : i32
    %c0_i32_0 = arith.constant 0 : i32
    %c0_i32_1 = arith.constant 0 : i32
    return %c0_i32, %arg0, %c0_i32_0 : i32, i32, i32
  }
  func.func @transform_2(%arg0: i32) -> (i32, i32, i32) {
    %c1_i32 = arith.constant 1 : i32
    %0 = arith.addi %arg0, %c1_i32 : i32
    %c2_i32 = arith.constant 2 : i32
    %1 = arith.muli %0, %c2_i32 : i32
    %c5_i32 = arith.constant 5 : i32
    %2 = arith.minsi %1, %c5_i32 : i32
    %c0_i32 = arith.constant 0 : i32
    %c0_i32_0 = arith.constant 0 : i32
    %c0_i32_1 = arith.constant 0 : i32
    return %c0_i32, %2, %c0_i32_0 : i32, i32, i32
  }
  func.func @transform_3(%arg0: i32) -> (i32, i32, i32) {
    %c0_i32 = arith.constant 0 : i32
    %c0_i32_0 = arith.constant 0 : i32
    %c0_i32_1 = arith.constant 0 : i32
    return %c0_i32, %arg0, %c0_i32_0 : i32, i32, i32
  }
  func.func @transform_4(%arg0: i32) -> (i32, i32, i32) {
    %c0_i32 = arith.constant 0 : i32
    %c0_i32_0 = arith.constant 0 : i32
    %c0_i32_1 = arith.constant 0 : i32
    return %c0_i32, %arg0, %c0_i32_0 : i32, i32, i32
  }
}

</mosaic_0001>

<llo_original>
// kernel: tpu_custom_call.1
$region0: #{tpu_custom_call.1}
  #allocation0 [shape = 'u32[]', space=smem, size = 0x4, offset = 0x4, fixed_abs, tag = 'smem constant byte address 0x4 - core index']
  #allocation1 [shape = 'u32[72,128]{1,0:T(1,128)}', space=vmem, size = 0x9000, scoped, tag = 'internal scratch']
  #allocation2 [shape = 'f32[1,1]{1,0:T(1,128)S(6)}', space=smem, size = 0x200, scoped, tag = 'scoped memory for tpu_custom_call.1']
  #allocation7 [shape = 's32[]', space=sflag, size = 0x4, offset = 0, fixed_abs, tag = 'sflag constant byte address 0x0 - dummy sync flag']
  #allocation9 [shape = 's32[]', space=sflag, size = 0x4, offset = 0, fixed_abs, tag = 'sflag constant byte address 0x0 - dummy sync flag']
  %s0 = inlined_call_operand.<no memory space> [shape: f32[1,1], index: 0, kind: input, shape index: {}]
  %s1 = inlined_call_operand.vmem [shape: f32[1,48,128], index: 1, kind: input, shape index: {}]
  %s2 = inlined_call_operand.vmem [shape: f32[1,48,128], index: 2, kind: input, shape index: {}]
  %s3 = inlined_call_operand.hbm [shape: f32[2,48,128], index: 3, kind: input, shape index: {}, may-alias: {3,4}]
  %s4 = inlined_call_operand.hbm [shape: f32[2,48,128], index: 4, kind: output, shape index: {}, may-alias: {3,4}]
  %s5 = sld [smem:[#allocation0]]
  $region53: #{tpu_custom_call.1} parent=0
    _
  %s7 = ssub.s32 1, %s5
  %s8 = scalar_select 0, %s7, %s5
  %9 = sst [smem:[#allocation2]] %s0
  $region1: #{tpu_custom_call.1} parent=0
    #allocation3 [shape = 'u8[32768]{0}', space=vmem, size = 0x8000, scoped, tag = 'input window, operand 3']
    #allocation4 [shape = 's32[2]{0}', space=sflag, size = 0x8, scoped, tag = 'scoped memory for tpu_custom_call.1']
    #allocation5 [shape = 's32[2]{0}', space=sflag, size = 0x8, scoped, tag = 'scoped memory for tpu_custom_call.1']
    #allocation6 [shape = 'u8[32768]{0}', space=vmem, size = 0x8000, scoped, tag = 'output window, operand 0']
    %10 = vsyncpa [#allocation4], 0
    %s11 = scalar_lea.sflag [#allocation4], 1
    %12 = vsyncpa %s11, 0
    %13 = vsyncpa [#allocation5], 0
    %s14 = scalar_lea.sflag [#allocation5], 1
    %15 = vsyncpa %s14, 0
    loop: start=0, step=1, limit=5
    $region2: #{tpu_custom_call.1} parent=1 // loop_pre_header
      _
    $region3: #{tpu_custom_call.1} parent=1 // loop_header
      %s17 = sphi 0, %s21
      %p18 = scmp.ge.s32.totalorder %s17, 5
      %s25 = sphi 0, %s25
      %s27 = sphi 0, %s25
      %s28 = sphi 0, %s27
      %s42 = sphi 0, %s28
      %s48 = sphi 0, %s50
      %s51 = sphi 0, %s48
      %s52 = sphi 0, %s51
      %s68 = sphi 0, %s52
      %s82 = sphi 0, %s84
      %s85 = sphi 0, %s82
      %s86 = sphi 0, %s85
      %s102 = sphi 0, %s86
      %s108 = sphi 0, %s110
      %s111 = sphi 0, %s108
      %s112 = sphi 0, %s111
      %s128 = sphi 0, %s112
      %s134 = sphi 0, %s136
      %s137 = sphi 0, %s134
      %s138 = sphi 0, %s137
      %s154 = sphi 0, %s138
    $region4: #{tpu_custom_call.1} parent=1 // loop_header_branch
      %20 = sbr.rel (%p18) target = $region8
    $region5: #{tpu_custom_call.1} parent=1 // loop_body
      %s22 = ssub.s32 %s17, 1
      %s23 = ssub.s32 %s17, 2
      %s24 = sadd.s32 %s17, 1
      %s26 = sadd.s32 %s25, 1
      %p29 = scmp.eq.s32.totalorder %s17, 2
      %p30 = scmp.ne.s32.totalorder %s25, %s27
      %p31 = scmp.eq.s32.totalorder %s17, 0
      %p32 = por %p30, %p31
      %p33 = scmp.ne.s32.totalorder %s25, %s27
      %p34 = scmp.eq.s32.totalorder %s22, 2
      %p35 = por %p33, %p34
      %p36 = scmp.ne.s32.totalorder %s27, %s28
      %p37 = scmp.eq.s32.totalorder %s22, 0
      %p38 = por %p36, %p37
      %p39 = scmp.ne.s32.totalorder %s27, %s28
      %p40 = scmp.eq.s32.totalorder %s23, 2
      %p41 = por %p39, %p40
      %p43 = scmp.ne.s32.totalorder %s28, %s42
      %p44 = scmp.eq.s32.totalorder %s23, 0
      %p45 = por %p43, %p44
      %s46 = ssub.s32 %s17, %s24
      %p47 = scmp.eq.s32.totalorder %s46, 0
      %s49 = sadd.s32 %s48, 1
      %s50 = scalar_select %p47, %s48, %s49
      %p53 = pneg %p47
      %p54 = scmp.eq.s32.totalorder %s17, 2
      %p55 = por %p53, %p54
      %p56 = scmp.ne.s32.totalorder %s48, %s51
      %p57 = scmp.eq.s32.totalorder %s17, 0
      %p58 = por %p56, %p57
      %p59 = scmp.ne.s32.totalorder %s48, %s51
      %p60 = scmp.eq.s32.totalorder %s22, 2
      %p61 = por %p59, %p60
      %p62 = scmp.ne.s32.totalorder %s51, %s52
      %p63 = scmp.eq.s32.totalorder %s22, 0
      %p64 = por %p62, %p63
      %p65 = scmp.ne.s32.totalorder %s51, %s52
      %p66 = scmp.eq.s32.totalorder %s23, 2
      %p67 = por %p65, %p66
      %p69 = scmp.ne.s32.totalorder %s52, %s68
      %p70 = scmp.eq.s32.totalorder %s23, 0
      %p71 = por %p69, %p70
      %s72 = sadd.s32 %s17, 1
      %s73 = smul.u32 %s72, 2
      %p74 = scmp.lt.s32.totalorder %s73, 5
      %s75 = scalar_select %p74, %s73, 5
      %s76 = sadd.s32 %s24, 1
      %s77 = smul.u32 %s76, 2
      %p78 = scmp.lt.s32.totalorder %s77, 5
      %s79 = scalar_select %p78, %s77, 5
      %s80 = ssub.s32 %s75, %s79
      %p81 = scmp.eq.s32.totalorder %s80, 0
      %s83 = sadd.s32 %s82, 1
      %s84 = scalar_select %p81, %s82, %s83
      %p87 = pneg %p81
      %p88 = scmp.eq.s32.totalorder %s17, 2
      %p89 = por %p87, %p88
      %p90 = scmp.ne.s32.totalorder %s82, %s85
      %p91 = scmp.eq.s32.totalorder %s17, 0
      %p92 = por %p90, %p91
      %p93 = scmp.ne.s32.totalorder %s82, %s85
      %p94 = scmp.eq.s32.totalorder %s22, 2
      %p95 = por %p93, %p94
      %p96 = scmp.ne.s32.totalorder %s85, %s86
      %p97 = scmp.eq.s32.totalorder %s22, 0
      %p98 = por %p96, %p97
      %p99 = scmp.ne.s32.totalorder %s85, %s86
      %p100 = scmp.eq.s32.totalorder %s23, 2
      %p101 = por %p99, %p100
      %p103 = scmp.ne.s32.totalorder %s86, %s102
      %p104 = scmp.eq.s32.totalorder %s23, 0
      %p105 = por %p103, %p104
      %s106 = ssub.s32 %s17, %s24
      %p107 = scmp.eq.s32.totalorder %s106, 0
      %s109 = sadd.s32 %s108, 1
      %s110 = scalar_select %p107, %s108, %s109
      %p113 = pneg %p107
      %p114 = scmp.eq.s32.totalorder %s17, 2
      %p115 = por %p113, %p114
      %p116 = scmp.ne.s32.totalorder %s108, %s111
      %p117 = scmp.eq.s32.totalorder %s17, 0
      %p118 = por %p116, %p117
      %p119 = scmp.ne.s32.totalorder %s108, %s111
      %p120 = scmp.eq.s32.totalorder %s22, 2
      %p121 = por %p119, %p120
      %p122 = scmp.ne.s32.totalorder %s111, %s112
      %p123 = scmp.eq.s32.totalorder %s22, 0
      %p124 = por %p122, %p123
      %p125 = scmp.ne.s32.totalorder %s111, %s112
      %p126 = scmp.eq.s32.totalorder %s23, 2
      %p127 = por %p125, %p126
      %p129 = scmp.ne.s32.totalorder %s112, %s128
      %p130 = scmp.eq.s32.totalorder %s23, 0
      %p131 = por %p129, %p130
      %s132 = ssub.s32 %s17, %s24
      %p133 = scmp.eq.s32.totalorder %s132, 0
      %s135 = sadd.s32 %s134, 1
      %s136 = scalar_select %p133, %s134, %s135
      %p139 = pneg %p133
      %p140 = scmp.eq.s32.totalorder %s17, 2
      %p141 = por %p139, %p140
      %p142 = scmp.ne.s32.totalorder %s134, %s137
      %p143 = scmp.eq.s32.totalorder %s17, 0
      %p144 = por %p142, %p143
      %p145 = scmp.ne.s32.totalorder %s134, %s137
      %p146 = scmp.eq.s32.totalorder %s22, 2
      %p147 = por %p145, %p146
      %p148 = scmp.ne.s32.totalorder %s137, %s138
      %p149 = scmp.eq.s32.totalorder %s22, 0
      %p150 = por %p148, %p149
      %p151 = scmp.ne.s32.totalorder %s137, %s138
      %p152 = scmp.eq.s32.totalorder %s23, 2
      %p153 = por %p151, %p152
      %p155 = scmp.ne.s32.totalorder %s138, %s154
      %p156 = scmp.eq.s32.totalorder %s23, 0
      %p157 = por %p155, %p156
      %p158 = scmp.le.s32.totalorder 1, %s17
      %p159 = scmp.lt.s32.totalorder %s17, 4
      %p160 = pnand %p158, %p159
      %p161 = pneg %p160
      // Predicated region
      $region9: #{tpu_custom_call.1} parent=5 // pred_check
        _
      $region10: #{tpu_custom_call.1} parent=5 // pred_check_branch
        %163 = sbr.rel (%p160) target = $region12
      $region11: #{tpu_custom_call.1} parent=5 // pred_region
        %s164 = ssub.s32 %s17, 1
        // Predicated region
        $region13: #{tpu_custom_call.1} parent=11 // pred_check
          %p165 = pneg %p38
        $region14: #{tpu_custom_call.1} parent=11 // pred_check_branch
          %167 = sbr.rel (%p165) target = $region16
        $region15: #{tpu_custom_call.1} parent=11 // pred_region
          _
        $region16: #{tpu_custom_call.1} parent=11 // pred_fallthru
          _
      $region12: #{tpu_custom_call.1} parent=5 // pred_fallthru
        _
      %p168 = scmp.lt.s32.totalorder %s17, 3
      // Predicated region
      $region17: #{tpu_custom_call.1} parent=5 // pred_check
        %p169 = pneg %p168
      $region18: #{tpu_custom_call.1} parent=5 // pred_check_branch
        %171 = sbr.rel (%p169) target = $region20
      $region19: #{tpu_custom_call.1} parent=5 // pred_region
        // Predicated region
        $region21: #{tpu_custom_call.1} parent=19 // pred_check
          %p172 = pneg %p58
        $region22: #{tpu_custom_call.1} parent=19 // pred_check_branch
          %174 = sbr.rel (%p172) target = $region24
        $region23: #{tpu_custom_call.1} parent=19 // pred_region
          %s175 = smul.u32 2, %s17
          %p176 = scmp.lt.s32.totalorder %s175, 5
          %s177 = scalar_select %p176, %s175, 5
          %s178 = smul.addr %s177, 8
          %s179 = scalar_lea.vmem %s1, %s178
          %s180 = smul.u32 2, %s17
        $region24: #{tpu_custom_call.1} parent=19 // pred_fallthru
          _
        // Predicated region
        $region25: #{tpu_custom_call.1} parent=19 // pred_check
          %p181 = pneg %p92
        $region26: #{tpu_custom_call.1} parent=19 // pred_check_branch
          %183 = sbr.rel (%p181) target = $region28
        $region27: #{tpu_custom_call.1} parent=19 // pred_region
          %s184 = sadd.s32 %s17, 1
          %s185 = smul.u32 %s184, 2
          %p186 = scmp.lt.s32.totalorder %s185, 5
          %s187 = scalar_select %p186, %s185, 5
          %p188 = scmp.lt.s32.totalorder %s187, 5
          %s189 = scalar_select %p188, %s187, 5
          %s190 = smul.addr %s189, 8
          %s191 = scalar_lea.vmem %s2, %s190
          %s192 = sadd.s32 %s17, 1
          %s193 = smul.u32 %s192, 2
          %p194 = scmp.lt.s32.totalorder %s193, 5
          %s195 = scalar_select %p194, %s193, 5
        $region28: #{tpu_custom_call.1} parent=19 // pred_fallthru
          _
        // Predicated region
        $region29: #{tpu_custom_call.1} parent=19 // pred_check
          %p196 = pneg %p118
        $region30: #{tpu_custom_call.1} parent=19 // pred_check_branch
          %198 = sbr.rel (%p196) target = $region32
        $region31: #{tpu_custom_call.1} parent=19 // pred_region
          #allocation8 [shape = 'u32[6]{0}', space=smem, size = 0x18, scoped, tag = 'DMA stride descriptor']
          %s199 = sand.u32 %s108, 1
          %s200 = scalar_lea.sflag [#allocation4], %s199
          %s201 = sand.u32 %s108, 1
          %s202 = smul.addr %s201, 32
          %s203 = scalar_lea.vmem [#allocation3], %s202
          %s204 = smul.u32 2, %s17
          %206 = vsyncadd %s200, 0
          %s207 = smul.addr %s204, 8
          %s208 = scalar_lea.hbm %s3, %s207
          %s210 = sshll.u32 1, 14
          %s211 = sxor.u32 4294967295, %s210
          %s213 = sld [smem:[#allocation0]]
          %s214 = sadd.s32 2, %s213
          %s216 = sshll.u32 7, 26
          %s217 = sxor.u32 4294967295, %s216
          %s218 = sand.u32 0, %s217
          %s219 = sshll.u32 %s214, 26
          %s220 = sor.u32 %s218, %s219
          %s221 = sshll.u32 %s208, 4
          %s222 = int_to_ptr.hbm [resolvable:$true] %s221
          %s223 = sshll.u32 %s203, 4
          %s224 = int_to_ptr.vmem [resolvable:$true] %s223
          %230 = sst [smem:[#allocation8]] 768
          %s231 = scalar_lea.smem [#allocation8], 1
          %232 = sst [smem:[%s231]] 256
          %s233 = scalar_lea.smem [#allocation8], 2
          %234 = sst [smem:[%s233]] 2
          %s235 = scalar_lea.smem [#allocation8], 3
          %236 = sst [smem:[%s235]] 128
          %s237 = scalar_lea.smem [#allocation8], 4
          %238 = sst [smem:[%s237]] 128
          %s239 = scalar_lea.smem [#allocation8], 5
          %240 = sst [smem:[%s239]] 8
          %242 = dma.general %s222, 512, %s224, %s200, [#allocation7], [#allocation8], %s220, 0
        $region32: #{tpu_custom_call.1} parent=19 // pred_fallthru
          _
      $region20: #{tpu_custom_call.1} parent=5 // pred_fallthru
        _
      %p243 = scmp.le.s32.totalorder 1, %s17
      %p244 = scmp.lt.s32.totalorder %s17, 4
      %p245 = pnand %p243, %p244
      %p246 = pneg %p245
      // Predicated region
      $region33: #{tpu_custom_call.1} parent=5 // pred_check
        _
      $region34: #{tpu_custom_call.1} parent=5 // pred_check_branch
        %248 = sbr.rel (%p245) target = $region36
      $region35: #{tpu_custom_call.1} parent=5 // pred_region
        %s249 = ssub.s32 %s17, 1
        %s250 = sand.u32 %s111, 1
        %s251 = scalar_lea.sflag [#allocation4], %s250
        %s252 = sand.u32 %s111, 1
        %s253 = smul.addr %s252, 32
        %s254 = scalar_lea.vmem [#allocation3], %s253
        // Predicated region
        $region37: #{tpu_custom_call.1} parent=35 // pred_check
          %p255 = pneg %p124
        $region38: #{tpu_custom_call.1} parent=35 // pred_check_branch
          %257 = sbr.rel (%p255) target = $region40
        $region39: #{tpu_custom_call.1} parent=35 // pred_region
          %259 = dma.done %s251, 512
        $region40: #{tpu_custom_call.1} parent=35 // pred_fallthru
          _
        %p260 = pneg %p38
        %p261 = pneg %p35
        %s262 = smul.u32 2, %s22
        %p263 = scmp.lt.s32.totalorder %s262, 5
        %s264 = scalar_select %p263, %s262, 5
        %s265 = smul.addr %s264, 8
        %s266 = scalar_lea.vmem %s1, %s265
        %p267 = pneg %p64
        %p268 = pneg %p61
        %s269 = sadd.s32 %s22, 1
        %s270 = smul.u32 %s269, 2
        %p271 = scmp.lt.s32.totalorder %s270, 5
        %s272 = scalar_select %p271, %s270, 5
        %p273 = scmp.lt.s32.totalorder %s272, 5
        %s274 = scalar_select %p273, %s272, 5
        %s275 = smul.addr %s274, 8
        %s276 = scalar_lea.vmem %s2, %s275
        %p277 = pneg %p98
        %p278 = pneg %p95
        %s279 = sand.u32 %s111, 1
        %s280 = scalar_lea.sflag [#allocation4], %s279
        %s281 = sand.u32 %s111, 1
        %s282 = smul.addr %s281, 32
        %s283 = scalar_lea.vmem [#allocation3], %s282
        %p284 = pneg %p124
        %p285 = pneg %p121
        %p286 = pneg %p150
        %p287 = pneg %p147
        %s288 = sand.u32 %s137, 1
        %s289 = scalar_lea.sflag [#allocation5], %s288
        %s290 = sand.u32 %s137, 1
        %s291 = smul.addr %s290, 32
        %s292 = scalar_lea.vmem [#allocation6], %s291
        %s293 = smul.u32 2, %s22
        %p294 = scmp.lt.s32.totalorder %s293, 5
        %s295 = scalar_select %p294, %s293, 5
        %s296 = smul.addr %s295, 8
        %s297 = scalar_lea.vmem %s1, %s296
        %s298 = smul.u32 2, %s22
        %s299 = sadd.s32 %s22, 1
        %s300 = smul.u32 %s299, 2
        %p301 = scmp.lt.s32.totalorder %s300, 5
        %s302 = scalar_select %p301, %s300, 5
        %p303 = scmp.lt.s32.totalorder %s302, 5
        %s304 = scalar_select %p303, %s302, 5
        %s305 = smul.addr %s304, 8
        %s306 = scalar_lea.vmem %s2, %s305
        %s307 = sadd.s32 %s22, 1
        %s308 = smul.u32 %s307, 2
        %p309 = scmp.lt.s32.totalorder %s308, 5
        %s310 = scalar_select %p309, %s308, 5
        %s311 = smul.u32 2, %s22
        %s312 = smul.u32 2, %s22
        %s313 = sld [smem:[#allocation2]]
        %v314 = vld [vmem:[%s297] sm:$0xff]
        %v315 = vld [vmem:[%s297 + $0x8] sm:$0xff]
        %316 = vrot.lane.b32.xlu0 %v314, 127
        %v317 = vpop.permute.xlu0 %316
        %318 = vrot.lane.b32.xlu0 %v315, 127
        %v319 = vpop.permute.xlu0 %318
        %v320 = vlaneseq
        %v321 = vand.u32 %v320, 127
        %vm322 = vcmp.lt.s32.totalorder %v321, 127
        %v323 = vsub.f32 %v317, %v314
        %v324 = vsub.f32 %v319, %v315
        %v325 = vsel %vm322, 1, 0
        %vm326 = vcmp.eq.s32.totalorder %v325, 1
        %v327 = vsel %vm326, %v323, 0.0
        %v328 = vsel %vm326, %v324, 0.0
        %v329 = vrot.slane %v314, 1
        %v330 = vrot.slane %v315, 1
        %v331 = vlaneseq
        %v332 = vshrl.u32 %v331, 7
        %vm333 = vcmp.lt.s32.totalorder %v332, 7
        %v334 = vsel %vm333, %v329, %v330
        %v335 = vsel %vm333, %v330, %v329
        %v336 = vld [vmem:[%s306] sm:$0x1]
        %v337 = vadd.s32 %v332, 8
        %vm338 = vcmp.lt.s32.totalorder %v332, 15
        %vm339 = vcmp.lt.s32.totalorder %v337, 15
        %v340 = vsel %vm338, 1, 0
        %v341 = vsel %vm339, 1, 0
        %vm342 = vcmp.eq.s32.totalorder %v340, 1
        %vm343 = vcmp.eq.s32.totalorder %v341, 1
        %v344 = vperm.slane %v336, 0
        %v345 = vsel %vm342, %v334, %v344
        %v346 = vsel %vm343, %v335, %v344
        %s347 = smul.u32 %s22, 16
        %v348 = vstv %s347
        %v349 = vadd.s32 %v332, %v348
        %v350 = vadd.s32 %v337, %v348
        %vm351 = vcmp.lt.s32.totalorder %v349, 47
        %vm352 = vcmp.lt.s32.totalorder %v350, 47
        %v353 = vsub.f32 %v345, %v314
        %v354 = vsub.f32 %v346, %v315
        %v355 = vsel %vm351, 1, 0
        %v356 = vsel %vm352, 1, 0
        %vm357 = vcmp.eq.s32.totalorder %v355, 1
        %vm358 = vcmp.eq.s32.totalorder %v356, 1
        %v359 = vsel %vm357, %v353, 0.0
        %v360 = vsel %vm358, %v354, 0.0
        %v361 = vld [vmem:[%s254] sm:$0xff]
        %v362 = vld [vmem:[%s254 + $0x8] sm:$0xff]
        %v363 = vstv %s313
        %v364 = vmul.f32 %v363, %v327
        %v365 = vmul.f32 %v363, %v328
        %v366 = vadd.f32 %v361, %v364
        %v367 = vadd.f32 %v362, %v365
        %368 = vst [vmem:[%s292] sm:$0xff] %v366
        %369 = vst [vmem:[%s292 + $0x8] sm:$0xff] %v367
        %s370 = scalar_lea.vmem %s254, 16 [#allocation3]
        %v371 = vld [vmem:[%s370] sm:$0xff]
        %v372 = vld [vmem:[%s370 + $0x8] sm:$0xff]
        %v373 = vmul.f32 %v363, %v359
        %v374 = vmul.f32 %v363, %v360
        %v375 = vadd.f32 %v371, %v373
        %v376 = vadd.f32 %v372, %v374
        %s377 = scalar_lea.vmem %s292, 16 [#allocation6]
        %378 = vst [vmem:[%s377] sm:$0xff] %v375
        %379 = vst [vmem:[%s377 + $0x8] sm:$0xff] %v376
        %s380 = sand.u32 %s137, 1
        %s381 = scalar_lea.sflag [#allocation5], %s380
        %s382 = sand.u32 %s137, 1
        %s383 = smul.addr %s382, 32
        %s384 = scalar_lea.vmem [#allocation6], %s383
        // Predicated region
        $region41: #{tpu_custom_call.1} parent=35 // pred_check
          %p385 = pneg %p147
        $region42: #{tpu_custom_call.1} parent=35 // pred_check_branch
          %387 = sbr.rel (%p385) target = $region44
        $region43: #{tpu_custom_call.1} parent=35 // pred_region
          #allocation10 [shape = 'u32[6]{0}', space=smem, size = 0x18, scoped, tag = 'DMA stride descriptor']
          %s388 = smul.u32 2, %s22
          %390 = vsyncadd %s381, 0
          %s391 = smul.addr %s388, 8
          %s392 = scalar_lea.hbm %s4, %s391
          %s394 = sshll.u32 1, 14
          %s395 = sxor.u32 4294967295, %s394
          %s398 = sshll.u32 7, 18
          %s399 = sxor.u32 4294967295, %s398
          %s400 = sand.u32 0, %s399
          %s402 = sor.u32 %s400, 0
          %s403 = sshll.u32 %s384, 4
          %s404 = int_to_ptr.vmem [resolvable:$true] %s403
          %s405 = sshll.u32 %s392, 4
          %s406 = int_to_ptr.hbm [resolvable:$true] %s405
          %412 = sst [smem:[#allocation10]] 256
          %s413 = scalar_lea.smem [#allocation10], 1
          %414 = sst [smem:[%s413]] 768
          %s415 = scalar_lea.smem [#allocation10], 2
          %416 = sst [smem:[%s415]] 2
          %s417 = scalar_lea.smem [#allocation10], 3
          %418 = sst [smem:[%s417]] 128
          %s419 = scalar_lea.smem [#allocation10], 4
          %420 = sst [smem:[%s419]] 128
          %s421 = scalar_lea.smem [#allocation10], 5
          %422 = sst [smem:[%s421]] 8
          %424 = dma.general %s404, 512, %s406, %s381, [#allocation9], [#allocation10], %s402, 0
        $region44: #{tpu_custom_call.1} parent=35 // pred_fallthru
          _
      $region36: #{tpu_custom_call.1} parent=5 // pred_fallthru
        _
      %p425 = scmp.le.s32.totalorder 2, %s17
      // Predicated region
      $region45: #{tpu_custom_call.1} parent=5 // pred_check
        %p426 = pneg %p425
      $region46: #{tpu_custom_call.1} parent=5 // pred_check_branch
        %428 = sbr.rel (%p426) target = $region48
      $region47: #{tpu_custom_call.1} parent=5 // pred_region
        %s429 = ssub.s32 %s17, 2
        // Predicated region
        $region49: #{tpu_custom_call.1} parent=47 // pred_check
          %p430 = pneg %p153
        $region50: #{tpu_custom_call.1} parent=47 // pred_check_branch
          %432 = sbr.rel (%p430) target = $region52
        $region51: #{tpu_custom_call.1} parent=47 // pred_region
          %s433 = sand.u32 %s138, 1
          %s434 = scalar_lea.sflag [#allocation5], %s433
          %s435 = sand.u32 %s138, 1
          %s436 = smul.addr %s435, 32
          %s437 = scalar_lea.vmem [#allocation6], %s436
          %439 = dma.done %s434, 512
        $region52: #{tpu_custom_call.1} parent=47 // pred_fallthru
          _
      $region48: #{tpu_custom_call.1} parent=5 // pred_fallthru
        _
    $region6: #{tpu_custom_call.1} parent=1 // loop_footer
      %s21 = sadd.s32 1, %s17
    $region7: #{tpu_custom_call.1} parent=1 // loop_footer_branch
      %16 = sbr.rel target = $region3
    $region8: #{tpu_custom_call.1} parent=1 // loop_exit
      _
    %440 = vsyncpa [#allocation4], 1
    %s441 = scalar_lea.sflag [#allocation4], 1
    %442 = vsyncpa %s441, 1
    %443 = vsyncpa [#allocation5], 1
    %s444 = scalar_lea.sflag [#allocation5], 1
    %445 = vsyncpa %s444, 1

</llo_original>
